<compile_context>
chip_gen: v5e
topology: v5e:2x2
jax: 0.10.0
libtpu: 0.0.40
codegen_flags: <defaults>
</compile_context>

<pallas_src>
from functools import partial

import jax
import jax.numpy as jnp
from jax import lax
from jax.experimental import pallas as pl
from jax.experimental.pallas import tpu as pltpu

NORM_EPS = 1e-12  # eps used by torch.nn.functional.normalize


def _round_up(x, m):
    return (x + m - 1) // m * m


def ldcnet_head_kernel(x_ref, w_ref, logits_ref, glabel_ref, *, hw):
    # x_ref:      (TB, HW, C)  encoder feature map tile (channels on lanes)
    # w_ref:      (NCp, C)     pre-normalized fc weight, pre-scaled by temperature
    # logits_ref: (TB, NCp)    cosine logits * temperature (NCp lane-dense)
    # glabel_ref: (TB, C)      g_label = pooled (un-normalized) features
    x = x_ref[...]

    # adaptive_avg_pool2d(., 1): reduce over spatial positions in f32
    # (raw sum; the 1/HW mean factor cancels under L2 normalization).
    s = jnp.sum(x.astype(jnp.float32), axis=1)                  # (TB, C)

    # g_label needs the true mean. (Last dim C=64 is a masked store, but this
    # tile is ~HW times smaller than the input DMA — negligible; padding the
    # channel dim would double input HBM traffic instead.)
    glabel_ref[...] = (s * (1.0 / hw)).astype(glabel_ref.dtype)

    # F.normalize(pooled): pooled / max(||pooled||, eps)
    #   == s * rsqrt(max(||s||^2, (eps*HW)^2))   since s = HW * pooled.
    sumsq = jnp.sum(s * s, axis=-1, keepdims=True)              # (TB, 1)
    inv = lax.rsqrt(jnp.maximum(sumsq, jnp.float32((NORM_EPS * hw) ** 2)))
    pn = s * inv                                                # (TB, C)

    # Cosine classifier on the MXU: contract last dims of both operands
    # (trans_b form; no XLU transpose of the weight tile). Temperature is
    # already folded into w_ref by the wrapper.
    logits = lax.dot_general(
        pn, w_ref[...].astype(jnp.float32),
        dimension_numbers=(((1,), (1,)), ((), ())),
        preferred_element_type=jnp.float32)                     # (TB, NCp)
    logits_ref[...] = logits.astype(logits_ref.dtype)


def ldcnet_forward(feat_map_nchw, fc_weight, temperature, *, batch_tile=256):
    """LDCNET.forward (mode containing 'cos', non-'encoder').

    feat_map_nchw: (B, C, H, W) encoder output (PyTorch NCHW convention)
    fc_weight:     (num_classes, C)
    returns:       (logits (B, num_classes), g_label (B, C))
    """
    B, C, H, W = feat_map_nchw.shape
    NC = fc_weight.shape[0]
    HW = H * W

    # NCHW -> (B, HW, C): channels on the 128-lane axis for the kernel.
    # TODO(synk): drop this transpose once the encoder emits channels-last.
    x = jnp.transpose(feat_map_nchw, (0, 2, 3, 1)).reshape(B, HW, C)

    # Batch tiling: biggest double-bufferable tile within default scoped VMEM
    # (batch_tile=256, HW=64, C=64 f32 -> ~4 MiB/buffer, 8 MiB double-buffered).
    if B <= batch_tile:
        TB = B
        Bp = B
    else:
        TB = _round_up(min(batch_tile, B), 8)
        Bp = _round_up(B, TB)
    if Bp != B:
        x = jnp.pad(x, ((0, Bp - B), (0, 0), (0, 0)))

    # Hoist the per-call-constant weight normalization + temperature fold out
    # of the per-tile path; pad classes to lane width so the logits output is
    # lane-dense (padded rows are zero -> zero logits, sliced off below).
    NCp = _round_up(NC, 128)
    w = fc_weight.astype(jnp.float32)
    w_inv = lax.rsqrt(
        jnp.maximum(jnp.sum(w * w, axis=-1, keepdims=True),
                    jnp.float32(NORM_EPS ** 2)))
    wn = (jnp.float32(temperature) * w) * w_inv                 # (NC, C)
    wn = jnp.pad(wn, ((0, NCp - NC), (0, 0)))                   # (NCp, C)

    kernel = partial(ldcnet_head_kernel, hw=HW)
    logits_p, g_label_p = pl.pallas_call(
        kernel,
        grid=(Bp // TB,),
        in_specs=[
            pl.BlockSpec((TB, HW, C), lambda i: (i, 0, 0)),   # batch-tiled input
            pl.BlockSpec((NCp, C), lambda i: (0, 0)),         # weight resident
        ],
        out_specs=[
            pl.BlockSpec((TB, NCp), lambda i: (i, 0)),
            pl.BlockSpec((TB, C), lambda i: (i, 0)),
        ],
        out_shape=(
            jax.ShapeDtypeStruct((Bp, NCp), jnp.float32),
            jax.ShapeDtypeStruct((Bp, C), jnp.float32),
        ),
        compiler_params=pltpu.CompilerParams(
            dimension_semantics=("parallel",)),
    )(x, wn)

    return logits_p[:B, :NC], g_label_p[:B, :C]


def _reference_forward(feat_map_nchw, fc_weight, temperature):
    """Pure-JAX reference mirroring the PyTorch semantics."""
    pooled = jnp.mean(feat_map_nchw.astype(jnp.float32), axis=(2, 3))  # (B, C)
    pn = pooled / jnp.maximum(
        jnp.linalg.norm(pooled, axis=-1, keepdims=True), NORM_EPS)
    wn = fc_weight / jnp.maximum(
        jnp.linalg.norm(fc_weight, axis=-1, keepdims=True), NORM_EPS)
    logits = temperature * (pn @ wn.T)
    return logits, pooled


if __name__ == "__main__":
    # cifar100 configuration of LDCNET: num_features=64, num_classes=100.
    # Encoder feature map of a resnet20 on CIFAR images has spatial 8x8.
    B, C, H, W = 2, 64, 8, 8
    NUM_CLASSES = 100
    TEMPERATURE = 16.0

    key = jax.random.PRNGKey(0)
    k_x, k_w = jax.random.split(key)
    feat_map = jax.random.normal(k_x, (B, C, H, W), dtype=jnp.float32)
    # nn.Linear(64, 100, bias=False) kaiming-uniform-ish deterministic init.
    bound = 1.0 / jnp.sqrt(jnp.float32(C))
    fc_weight = jax.random.uniform(
        k_w, (NUM_CLASSES, C), minval=-bound, maxval=bound, dtype=jnp.float32)

    logits, g_label = ldcnet_forward(feat_map, fc_weight, TEMPERATURE)
    logits = jax.block_until_ready(logits)
    g_label = jax.block_until_ready(g_label)

    ref_logits, ref_glabel = _reference_forward(feat_map, fc_weight, TEMPERATURE)
    assert logits.shape == (B, NUM_CLASSES)
    assert g_label.shape == (B, C)
    assert jnp.allclose(logits, ref_logits, atol=1e-4, rtol=1e-4)
    assert jnp.allclose(g_label, ref_glabel, atol=1e-5, rtol=1e-5)

    print("KERNEL_OK")
</pallas_src>

<mosaic_0001>
module attributes {stable_mosaic.version = 11 : i64} {
  func.func @ldcnet_head_kernel(%arg0: i32, %arg1: memref<2x64x64xf32, #tpu.memory_space<vmem>>, %arg2: memref<128x64xf32, #tpu.memory_space<vmem>>, %arg3: memref<2x128xf32, #tpu.memory_space<vmem>>, %arg4: memref<2x64xf32, #tpu.memory_space<vmem>>) attributes {dimension_semantics = [#tpu.dimension_semantics<parallel>], iteration_bounds = array<i64: 1>, scalar_prefetch = 0 : i64, scratch_operands = 0 : i64, tpu.core_type = #tpu.core_type<tc>, window_params = [{transform_indices = @transform_0, window_bounds = array<i64: 2, 64, 64>}, {pipeline_mode = #tpu.pipeline_mode<synchronous>, transform_indices = @transform_1, window_bounds = array<i64: 128, 64>}, {transform_indices = @transform_2, window_bounds = array<i64: 2, 128>}, {transform_indices = @transform_3, window_bounds = array<i64: 2, 64>}]} {
    %c0 = arith.constant 0 : index
    %c0_0 = arith.constant 0 : index
    %c0_1 = arith.constant 0 : index
    %0 = vector.load %arg1[%c0, %c0_0, %c0_1] : memref<2x64x64xf32, #tpu.memory_space<vmem>>, vector<2x64x64xf32>
    %cst = arith.constant dense<0.000000e+00> : vector<2x64xf32>
    %1 = vector.multi_reduction <add>, %0, %cst [1] : vector<2x64x64xf32> to vector<2x64xf32>
    %cst_2 = arith.constant 1.562500e-02 : f32
    %2 = vector.broadcast %cst_2 : f32 to vector<2x64xf32>
    %3 = arith.mulf %1, %2 : vector<2x64xf32>
    %c0_3 = arith.constant 0 : index
    %c0_4 = arith.constant 0 : index
    %4 = vector.load %arg4[%c0_3, %c0_4] : memref<2x64xf32, #tpu.memory_space<vmem>>, vector<2x64xf32>
    tpu.vector_store %arg4[%c0_3, %c0_4], %3 {strides = array<i32>} : memref<2x64xf32, #tpu.memory_space<vmem>>, vector<2x64xf32>,
    %5 = arith.mulf %1, %1 : vector<2x64xf32>
    %cst_5 = arith.constant dense<0.000000e+00> : vector<2xf32>
    %6 = vector.multi_reduction <add>, %5, %cst_5 [1] : vector<2x64xf32> to vector<2xf32>
    %7 = vector.shape_cast %6 : vector<2xf32> to vector<2x1xf32>
    %cst_6 = arith.constant 4.096000e-21 : f32
    %8 = vector.broadcast %cst_6 : f32 to vector<2x1xf32>
    %9 = arith.maximumf %7, %8 : vector<2x1xf32>
    %10 = math.rsqrt %9 : vector<2x1xf32>
    %11 = vector.broadcast %10 : vector<2x1xf32> to vector<2x64xf32>
    %12 = arith.mulf %1, %11 : vector<2x64xf32>
    %c0_7 = arith.constant 0 : index
    %c0_8 = arith.constant 0 : index
    %13 = vector.load %arg2[%c0_7, %c0_8] : memref<128x64xf32, #tpu.memory_space<vmem>>, vector<128x64xf32>
    %cst_9 = arith.constant dense<0.000000e+00> : vector<2x128xf32>
    %14 = tpu.matmul %12, %13, %cst_9 {dimension_numbers = #tpu.dot_dimension_numbers<[1], [1], [0], [0], [0, 0, 1, 0], [], []>} : vector<2x64xf32>, vector<128x64xf32>, vector<2x128xf32> -> vector<2x128xf32>
    %c0_10 = arith.constant 0 : index
    %c0_11 = arith.constant 0 : index
    %15 = vector.load %arg3[%c0_10, %c0_11] : memref<2x128xf32, #tpu.memory_space<vmem>>, vector<2x128xf32>
    tpu.vector_store %arg3[%c0_10, %c0_11], %14 {strides = array<i32>} : memref<2x128xf32, #tpu.memory_space<vmem>>, vector<2x128xf32>,
    return
  }
  func.func @transform_0(%arg0: i32) -> (i32, i32, i32) {
    %c0_i32 = arith.constant 0 : i32
    %c0_i32_0 = arith.constant 0 : i32
    %c0_i32_1 = arith.constant 0 : i32
    return %arg0, %c0_i32, %c0_i32_0 : i32, i32, i32
  }
  func.func @transform_1(%arg0: i32) -> (i32, i32) {
    %c0_i32 = arith.constant 0 : i32
    %c0_i32_0 = arith.constant 0 : i32
    %c0_i32_1 = arith.constant 0 : i32
    return %c0_i32, %c0_i32_0 : i32, i32
  }
  func.func @transform_2(%arg0: i32) -> (i32, i32) {
    %c0_i32 = arith.constant 0 : i32
    %c0_i32_0 = arith.constant 0 : i32
    return %arg0, %c0_i32 : i32, i32
  }
  func.func @transform_3(%arg0: i32) -> (i32, i32) {
    %c0_i32 = arith.constant 0 : i32
    %c0_i32_0 = arith.constant 0 : i32
    return %arg0, %c0_i32 : i32, i32
  }
}

</mosaic_0001>

<llo_original>
// kernel: tpu_custom_call.1
$region0: #{tpu_custom_call.1}
  #allocation0 [shape = 'u32[]', space=smem, size = 0x4, offset = 0x4, fixed_abs, tag = 'smem constant byte address 0x4 - core index']
  #allocation1 [shape = 'u32[72,128]{1,0:T(1,128)}', space=vmem, size = 0x9000, scoped, tag = 'internal scratch']
  %s0 = inlined_call_operand.vmem [shape: f32[2,64,64], index: 0, kind: input, shape index: {}]
  %s1 = inlined_call_operand.vmem [shape: f32[128,64], index: 1, kind: input, shape index: {}]
  %s2 = inlined_call_operand.hbm [shape: f32[2,128], index: 2, kind: output, shape index: {0}]
  %s3 = inlined_call_operand.hbm [shape: f32[2,64], index: 3, kind: output, shape index: {1}]
  %4 = xla_tuple %s2, %s3
  %s5 = sld [smem:[#allocation0]]
  $region26: #{tpu_custom_call.1} parent=0
    _
  %s7 = ssub.s32 1, %s5
  %s8 = scalar_select 0, %s7, %s5
  $region1: #{tpu_custom_call.1} parent=0
    #allocation2 [shape = 'u8[1024]{0}', space=vmem, size = 0x400, scoped, tag = 'output window, operand 0, single buffered']
    #allocation3 [shape = 's32[1]{0}', space=sflag, size = 0x4, scoped, tag = 'scoped memory for tpu_custom_call.1']
    #allocation4 [shape = 'u8[1024]{0}', space=vmem, size = 0x400, scoped, tag = 'output window, operand 1, single buffered']
    #allocation5 [shape = 's32[1]{0}', space=sflag, size = 0x4, scoped, tag = 'scoped memory for tpu_custom_call.1']
    %9 = vsyncpa [#allocation3], 0
    %10 = vsyncpa [#allocation5], 0
    // Predicated region
    $region2: #{tpu_custom_call.1} parent=1 // pred_check
      _
    $region3: #{tpu_custom_call.1} parent=1 // pred_check_branch
      %12 = sbr.rel (0) target = $region5
    $region4: #{tpu_custom_call.1} parent=1 // pred_region
      _
    $region5: #{tpu_custom_call.1} parent=1 // pred_fallthru
      _
    // Predicated region
    $region6: #{tpu_custom_call.1} parent=1 // pred_check
      _
    $region7: #{tpu_custom_call.1} parent=1 // pred_check_branch
      %14 = sbr.rel (0) target = $region9
    $region8: #{tpu_custom_call.1} parent=1 // pred_region
      _
    $region9: #{tpu_custom_call.1} parent=1 // pred_fallthru
      _
    %v15 = vld [vmem:[%s0] sm:$0xff]
    %v16 = vld [vmem:[%s0 + $0x8] sm:$0xff]
    %v17 = vld [vmem:[%s0 + $0x10] sm:$0xff]
    %v18 = vld [vmem:[%s0 + $0x18] sm:$0xff]
    %v19 = vld [vmem:[%s0 + $0x20] sm:$0xff]
    %v20 = vld [vmem:[%s0 + $0x28] sm:$0xff]
    %v21 = vld [vmem:[%s0 + $0x30] sm:$0xff]
    %v22 = vld [vmem:[%s0 + $0x38] sm:$0xff]
    %v23 = vld [vmem:[%s0 + $0x40] sm:$0xff]
    %v24 = vld [vmem:[%s0 + $0x48] sm:$0xff]
    %v25 = vld [vmem:[%s0 + $0x50] sm:$0xff]
    %v26 = vld [vmem:[%s0 + $0x58] sm:$0xff]
    %v27 = vld [vmem:[%s0 + $0x60] sm:$0xff]
    %v28 = vld [vmem:[%s0 + $0x68] sm:$0xff]
    %v29 = vld [vmem:[%s0 + $0x70] sm:$0xff]
    %v30 = vld [vmem:[%s0 + $0x78] sm:$0xff]
    %vm31 = vcmask 523264
    %v32 = vsel %vm31, %v15, 0.0
    %v33 = vsel %vm31, %v16, 0.0
    %v34 = vadd.f32 %v32, %v33
    %v35 = vsel %vm31, %v17, 0.0
    %v36 = vadd.f32 %v34, %v35
    %v37 = vsel %vm31, %v18, 0.0
    %v38 = vadd.f32 %v36, %v37
    %v39 = vsel %vm31, %v19, 0.0
    %v40 = vadd.f32 %v38, %v39
    %v41 = vsel %vm31, %v20, 0.0
    %v42 = vadd.f32 %v40, %v41
    %v43 = vsel %vm31, %v21, 0.0
    %v44 = vadd.f32 %v42, %v43
    %v45 = vsel %vm31, %v22, 0.0
    %v46 = vadd.f32 %v44, %v45
    %v47 = vrot.slane %v46, 4
    %v48 = vadd.f32 %v46, %v47
    %v49 = vrot.slane %v48, 2
    %v50 = vadd.f32 %v48, %v49
    %v51 = vrot.slane %v50, 1
    %v52 = vadd.f32 %v50, %v51
    %v53 = vsel %vm31, %v23, 0.0
    %v54 = vsel %vm31, %v24, 0.0
    %v55 = vadd.f32 %v53, %v54
    %v56 = vsel %vm31, %v25, 0.0
    %v57 = vadd.f32 %v55, %v56
    %v58 = vsel %vm31, %v26, 0.0
    %v59 = vadd.f32 %v57, %v58
    %v60 = vsel %vm31, %v27, 0.0
    %v61 = vadd.f32 %v59, %v60
    %v62 = vsel %vm31, %v28, 0.0
    %v63 = vadd.f32 %v61, %v62
    %v64 = vsel %vm31, %v29, 0.0
    %v65 = vadd.f32 %v63, %v64
    %v66 = vsel %vm31, %v30, 0.0
    %v67 = vadd.f32 %v65, %v66
    %v68 = vrot.slane %v67, 4
    %v69 = vadd.f32 %v67, %v68
    %v70 = vrot.slane %v69, 2
    %v71 = vadd.f32 %v69, %v70
    %v72 = vrot.slane %v71, 1
    %v73 = vadd.f32 %v71, %v72
    %v74 = vmul.f32 %v52, 0.015625
    %v75 = vmul.f32 %v73, 0.015625
    %vm78 = vcmask 1041409
    %v79 = vsel %vm78, %v75, %v74
    %vm81 = vcmask 517120
    %82 = vst.msk [vmem:[#allocation4] sm:$0x3] %vm81, %v79
    %v83 = vmul.f32 %v52, %v52
    %v84 = vmul.f32 %v73, %v73
    %v87 = vsel %vm78, %v84, %v83
    %v89 = vsel %vm81, %v87, 0.0
    %90 = vadd.xlane.f32.xlu0 %v89
    %v91 = vpop.xlane.xlu0 %90
    %v92 = vmax.f32 %v91, 4.096e-21
    %v93 = vrsqrt.pop %v92
    %v94 = vmul.f32 %v93, %v92
    %v95 = vmul.f32 %v94, %v93
    %v96 = vmul.f32 0.5, %v95
    %v97 = vsub.f32 1.5, %v96
    %v98 = vmul.f32 %v93, %v97
    %vm99 = vweird.f32 %v92
    %vm100 = vweird.f32 %v93
    %vm101 = vmor %vm99, %vm100
    %v102 = vsel %vm101, %v93, %v98
    %v104 = vrot.slane %v102, 1
    %v107 = vmul.f32 %v52, %v102
    %v108 = vmul.f32 %v73, %v104
    %v109 = vld [vmem:[%s1] sm:$0xff]
    %v110 = vld [vmem:[%s1 + $0x8] sm:$0xff]
    %v111 = vld [vmem:[%s1 + $0x10] sm:$0xff]
    %v112 = vld [vmem:[%s1 + $0x18] sm:$0xff]
    %v113 = vld [vmem:[%s1 + $0x20] sm:$0xff]
    %v114 = vld [vmem:[%s1 + $0x28] sm:$0xff]
    %v115 = vld [vmem:[%s1 + $0x30] sm:$0xff]
    %v116 = vld [vmem:[%s1 + $0x38] sm:$0xff]
    %v117 = vld [vmem:[%s1 + $0x40] sm:$0xff]
    %v118 = vld [vmem:[%s1 + $0x48] sm:$0xff]
    %v119 = vld [vmem:[%s1 + $0x50] sm:$0xff]
    %v120 = vld [vmem:[%s1 + $0x58] sm:$0xff]
    %v121 = vld [vmem:[%s1 + $0x60] sm:$0xff]
    %v122 = vld [vmem:[%s1 + $0x68] sm:$0xff]
    %v123 = vld [vmem:[%s1 + $0x70] sm:$0xff]
    %v124 = vld [vmem:[%s1 + $0x78] sm:$0xff]
    %v127 = vrot.slane %v108, 7
    %v128 = vsel %vm78, %v127, %v107
    %v129 = vsel %vm31, %v128, 0
    %v132 = vsel %vm31, %v109, 0
    %v135 = vsel %vm31, %v110, 0
    %v138 = vsel %vm31, %v111, 0
    %v141 = vsel %vm31, %v112, 0
    %v144 = vsel %vm31, %v113, 0
    %v147 = vsel %vm31, %v114, 0
    %v150 = vsel %vm31, %v115, 0
    %v153 = vsel %vm31, %v116, 0
    %v156 = vsel %vm31, %v117, 0
    %v159 = vsel %vm31, %v118, 0
    %v162 = vsel %vm31, %v119, 0
    %v165 = vsel %vm31, %v120, 0
    %v168 = vsel %vm31, %v121, 0
    %v171 = vsel %vm31, %v122, 0
    %v174 = vsel %vm31, %v123, 0
    %v177 = vsel %vm31, %v124, 0
    %179 = vmatpush.xpose.msra.mxu0 %v177
    %180 = vmatpush.xpose.msra.mxu0 %v174
    %181 = vmatpush.xpose.msra.mxu0 %v171
    %182 = vmatpush.xpose.msra.mxu0 %v168
    %183 = vmatpush.xpose.msra.mxu0 %v165
    %184 = vmatpush.xpose.msra.mxu0 %v162
    %185 = vmatpush.xpose.msra.mxu0 %v159
    %186 = vmatpush.xpose.msra.mxu0 %v156
    %187 = vmatpush.xpose.msra.mxu0 %v153
    %188 = vmatpush.xpose.msra.mxu0 %v150
    %189 = vmatpush.xpose.msra.mxu0 %v147
    %190 = vmatpush.xpose.msra.mxu0 %v144
    %191 = vmatpush.xpose.msra.mxu0 %v141
    %192 = vmatpush.xpose.msra.mxu0 %v138
    %193 = vmatpush.xpose.msra.mxu0 %v135
    %194 = vmatpush.xpose.msra.mxu0 %v132
    %195 = vmatmul.f32.gmra.mxu0 %v129
    %v196 = vpop.f32.mrf.mxu0
    %v197 = vadd.f32 0.0, %v196
    %198 = vdwg.mxu0
    %199 = vst [vmem:[#allocation2] sm:$0x3] %v197
    // Predicated region
    $region10: #{tpu_custom_call.1} parent=1 // pred_check
      _
    $region11: #{tpu_custom_call.1} parent=1 // pred_check_branch
      %201 = sbr.rel (0) target = $region13
    $region12: #{tpu_custom_call.1} parent=1 // pred_region
      %203 = vsyncadd [#allocation3], 0
      %s205 = sshll.u32 [#allocation2], 4
      %s206 = int_to_ptr.vmem [resolvable:$true] %s205
      %s207 = sshll.u32 %s2, 4
      %s208 = int_to_ptr.hbm [resolvable:$true] %s207
      %210 = dma.vmem_to_hbm [thread:$0]  %s206, 32, %s208, [#allocation3]
    $region13: #{tpu_custom_call.1} parent=1 // pred_fallthru
      _
    // Predicated region
    $region14: #{tpu_custom_call.1} parent=1 // pred_check
      _
    $region15: #{tpu_custom_call.1} parent=1 // pred_check_branch
      %212 = sbr.rel (0) target = $region17
    $region16: #{tpu_custom_call.1} parent=1 // pred_region
      %214 = vsyncadd [#allocation5], 0
      %s216 = sshll.u32 [#allocation4], 4
      %s217 = int_to_ptr.vmem [resolvable:$true] %s216
      %s218 = sshll.u32 %s3, 4
      %s219 = int_to_ptr.hbm [resolvable:$true] %s218
      %221 = dma.vmem_to_hbm [thread:$0]  %s217, 32, %s219, [#allocation5]
    $region17: #{tpu_custom_call.1} parent=1 // pred_fallthru
      _
    // Predicated region
    $region18: #{tpu_custom_call.1} parent=1 // pred_check
      _
    $region19: #{tpu_custom_call.1} parent=1 // pred_check_branch
      %223 = sbr.rel (0) target = $region21
    $region20: #{tpu_custom_call.1} parent=1 // pred_region
      %225 = dma.done [#allocation3], 32
    $region21: #{tpu_custom_call.1} parent=1 // pred_fallthru
      _
    // Predicated region
    $region22: #{tpu_custom_call.1} parent=1 // pred_check
      _
    $region23: #{tpu_custom_call.1} parent=1 // pred_check_branch
      %227 = sbr.rel (0) target = $region25
    $region24: #{tpu_custom_call.1} parent=1 // pred_region
      %229 = dma.done [#allocation5], 32
    $region25: #{tpu_custom_call.1} parent=1 // pred_fallthru
      _
    %230 = vsyncpa [#allocation3], 1
    %231 = vsyncpa [#allocation5], 1

</llo_original>
